<compile_context>
chip_gen: v7x
topology: tpu7x:2x2x1
jax: 0.10.0
libtpu: 0.0.40
codegen_flags: <defaults>
</compile_context>

<pallas_src>
import functools

import jax
import jax.numpy as jnp
from jax.experimental import pallas as pl
from jax.experimental.pallas import tpu as pltpu

KERNEL_SIZE = 10
PAD = 5


def _round_up(x, m):
    return -(-x // m) * m


def _tpu_flavor():
    kind = ""
    try:
        kind = jax.devices()[0].device_kind.lower()
    except Exception:
        pass
    is_v5 = "v5" in kind
    is_v6 = "v6" in kind
    is_v7 = ("v7" in kind) or ("7x" in kind)
    return is_v5, is_v6, is_v7


# ----------------------- Kernel 1: Conv1d + ReLU ---------------------------
def conv_kernel(x_ref, wk_ref, bconv_ref, a1_ref, *, lp):
    """One batch element per grid step.

    x_ref   : (1, LP+K-1, E) bf16 zero-padded embeddings
    wk_ref  : (K, E, H)      bf16 tap-major conv weights
    bconv   : (1, H)         f32 conv bias
    a1_ref  : (1, LP, H)     bf16 output (ReLU'd conv activations)
    """
    xb = x_ref[0]                                              # (L_in, E)
    # K shifted matmuls with contraction E, fp32 accumulator (no im2col blow-up).
    acc = jnp.dot(xb[0:lp, :], wk_ref[0],
                  preferred_element_type=jnp.float32)          # (LP, H)
    for k in range(1, KERNEL_SIZE):
        acc = acc + jnp.dot(xb[k:k + lp, :], wk_ref[k],
                            preferred_element_type=jnp.float32)
    a1 = jnp.maximum(acc + bconv_ref[...], 0.0)
    a1_ref[0] = a1.astype(a1_ref.dtype)


# ------------------- Kernel 2: attention + output head ---------------------
def attn_kernel(a1_ref, hwT_ref, owT_ref, bout_ref, out_ref, *,
                l_out, lp, bt, exp_dtype):
    """One (batch_tile, wiki_tile) grid step; fori_loop over batch elements.

    a1_ref   : (bt, LP, H) bf16
    hwT_ref  : (H, WT)     bf16  (H.weight^T tile)
    owT_ref  : (H, WT)     bf16  (output.weight^T tile)
    bout_ref : (1, WT)     f32
    out_ref  : (bt, WT)    f32
    """
    hwT = hwT_ref[...]                                         # bf16 for MXU
    owT = owT_ref[...].astype(jnp.float32)                     # hoisted f32 copy
    bout = bout_ref[...]

    # LP-padding rows (l >= l_out) carry nonzero logits (relu(bias)/tail
    # windows); mask them BEFORE the max/exp.  Do not remove this mask.
    valid = jax.lax.broadcasted_iota(jnp.int32, (lp, 1), 0) < l_out

    def body(b, carry):
        a1b = a1_ref[b]                                        # (LP, H) bf16
        s = jnp.dot(a1b, hwT, preferred_element_type=jnp.float32)  # (LP, WT)
        s = jnp.where(valid, s, -jnp.inf)
        s = s - jnp.max(s, axis=0, keepdims=True)
        # bf16 exp on v6e/v7x (EUP bf16 ~2x), fp32 on v5e.
        p = jnp.exp(s.astype(exp_dtype)).astype(jnp.float32)   # (LP, WT)
        inv = pl.reciprocal(jnp.sum(p, axis=0, keepdims=True), approx=True)
        alpha = (p * inv).astype(jnp.bfloat16)                 # softmax over L
        # m[h, w] = sum_l a1[l, h] * alpha[l, w]  (MXU, contraction over LP)
        m = jax.lax.dot_general(a1b, alpha, (((0,), (0,)), ((), ())),
                                preferred_element_type=jnp.float32)  # (H, WT)
        outb = jnp.sum(m * owT, axis=0, keepdims=True) + bout  # (1, WT)
        out_ref[pl.ds(b, 1), :] = jax.nn.sigmoid(outb).astype(out_ref.dtype)
        return carry

    jax.lax.fori_loop(0, bt, body, 0)


def caml_forward(note, params, *, b_tile=None, w_tile=None):
    is_v5, is_v6, is_v7 = _tpu_flavor()
    if b_tile is None:
        b_tile = 4 if is_v7 else 8          # smaller batch tile on 64 MiB v7x
    if w_tile is None:
        w_tile = 256 if is_v5 else 512      # v5e: keep fp32 logits small
    exp_dtype = jnp.float32 if is_v5 else jnp.bfloat16
    if is_v7:
        vmem_limit = 60 * 1024 * 1024
    elif is_v5 or is_v6:
        vmem_limit = 100 * 1024 * 1024
    else:
        vmem_limit = None

    # Embedding lookup (glue); dropout p=0.2 is identity at inference.
    emb = params["embedding"][note].astype(jnp.bfloat16)       # (B, L, E)
    B, L, E = emb.shape
    H = params["conv_w"].shape[0]
    W = params["H_w"].shape[0]

    L_out = L + 2 * PAD - KERNEL_SIZE + 1                      # = L + 1
    LP = _round_up(L_out, 16)                                  # bf16 sublane tile
    L_in = LP + KERNEL_SIZE - 1

    # Batch tiling: bt is the full (small) batch or the per-gen tile, so the
    # (bt, wt) output block is full-extent or a multiple of 8.
    bt = B if B < b_tile else b_tile
    B_pad = _round_up(B, bt)

    # Wiki tiling: wt is always a multiple of 128 and W is padded to a multiple
    # of wt, so every output store is lane-dense.
    wt = min(_round_up(w_tile, 128), _round_up(W, 128))
    W_pad = _round_up(W, wt)

    # Zero-pad embeddings: batch -> B_pad; sequence -> PAD head + tail so every
    # conv window of the LP output rows is in-bounds (extra rows masked later).
    n_tail = L_in - PAD - L
    x = jnp.pad(emb, ((0, B_pad - B), (PAD, n_tail), (0, 0)))  # (B_pad, L_in, E)

    # Weight prep: bf16 matmul operands, fp32 biases.
    wk = jnp.transpose(params["conv_w"], (2, 1, 0)).astype(jnp.bfloat16)  # (K,E,H)
    bconv = params["conv_b"][None, :].astype(jnp.float32)                 # (1,H)
    hwT = params["H_w"].T.astype(jnp.bfloat16)                            # (H,W)
    owT = params["out_w"].T.astype(jnp.bfloat16)                          # (H,W)
    bout = params["out_b"][None, :].astype(jnp.float32)                   # (1,W)
    if W_pad != W:
        hwT = jnp.pad(hwT, ((0, 0), (0, W_pad - W)))
        owT = jnp.pad(owT, ((0, 0), (0, W_pad - W)))
        bout = jnp.pad(bout, ((0, 0), (0, W_pad - W)))

    # ---- Kernel 1: conv + relu (one batch element per grid step) -----------
    a1 = pl.pallas_call(
        functools.partial(conv_kernel, lp=LP),
        out_shape=jax.ShapeDtypeStruct((B_pad, LP, H), jnp.bfloat16),
        grid_spec=pltpu.PrefetchScalarGridSpec(
            num_scalar_prefetch=0,
            grid=(B_pad,),
            in_specs=[
                pl.BlockSpec((1, L_in, E), lambda b: (b, 0, 0)),
                pl.BlockSpec((KERNEL_SIZE, E, H), lambda b: (0, 0, 0)),
                pl.BlockSpec((1, H), lambda b: (0, 0)),
            ],
            out_specs=pl.BlockSpec((1, LP, H), lambda b: (b, 0, 0)),
        ),
        compiler_params=pltpu.CompilerParams(
            dimension_semantics=("parallel",),
            vmem_limit_bytes=vmem_limit),
    )(x, wk, bconv)

    # ---- Kernel 2: attention + fused output head ----------------------------
    # Both grid axes "parallel": no cross-step state (a1 comes from HBM), so the
    # wiki axis can be megacore-sharded even when there is a single batch tile.
    out = pl.pallas_call(
        functools.partial(attn_kernel, l_out=L_out, lp=LP, bt=bt,
                          exp_dtype=exp_dtype),
        out_shape=jax.ShapeDtypeStruct((B_pad, W_pad), jnp.float32),
        grid_spec=pltpu.PrefetchScalarGridSpec(
            num_scalar_prefetch=0,
            grid=(B_pad // bt, W_pad // wt),
            in_specs=[
                pl.BlockSpec((bt, LP, H), lambda b, w: (b, 0, 0)),
                pl.BlockSpec((H, wt), lambda b, w: (0, w)),
                pl.BlockSpec((H, wt), lambda b, w: (0, w)),
                pl.BlockSpec((1, wt), lambda b, w: (0, w)),
            ],
            out_specs=pl.BlockSpec((bt, wt), lambda b, w: (b, w)),
        ),
        compiler_params=pltpu.CompilerParams(
            dimension_semantics=("parallel", "parallel"),
            vmem_limit_bytes=vmem_limit),
    )(a1, hwT, owT, bout)

    return out[:B, :W]


def caml_reference(note, params):
    """Pure-JAX fp32 reference mirroring the PyTorch forward."""
    emb = params["embedding"][note]                            # (B, L, E)
    x = jnp.transpose(emb, (0, 2, 1))                          # (B, E, L)
    y = jax.lax.conv_general_dilated(
        x, params["conv_w"], window_strides=(1,), padding=[(PAD, PAD)],
        dimension_numbers=("NCH", "OIH", "NCH"))
    y = y + params["conv_b"][None, :, None]
    a1 = jnp.maximum(jnp.transpose(y, (0, 2, 1)), 0.0)         # (B, L_out, H)
    alpha = jnp.einsum("wh,blh->bwl", params["H_w"], a1)
    alpha = jax.nn.softmax(alpha, axis=2)
    m = jnp.einsum("bwl,blh->bwh", alpha, a1)
    out = jnp.sum(params["out_w"][None] * m, axis=2) + params["out_b"]
    return jax.nn.sigmoid(out)


def init_params(key, n_words, n_wiki, n_embedding, n_hidden):
    ks = jax.random.split(key, 6)
    return {
        "embedding": 0.1 * jax.random.normal(
            ks[0], (n_words + 1, n_embedding), jnp.float32),
        "conv_w": 0.1 * jax.random.normal(
            ks[1], (n_hidden, n_embedding, KERNEL_SIZE), jnp.float32),
        "conv_b": 0.1 * jax.random.normal(ks[2], (n_hidden,), jnp.float32),
        "H_w": 0.1 * jax.random.normal(
            ks[3], (n_wiki, n_hidden), jnp.float32),
        "out_w": 0.1 * jax.random.normal(
            ks[4], (n_wiki, n_hidden), jnp.float32),
        "out_b": 0.1 * jax.random.normal(ks[5], (n_wiki,), jnp.float32),
    }


if __name__ == "__main__":
    # Small, CAML-consistent shapes.
    n_words, n_wiki, n_embedding, n_hidden = 50, 8, 32, 32
    B, L = 2, 16

    key = jax.random.PRNGKey(0)
    k_note, k_params = jax.random.split(key)
    params = init_params(k_params, n_words, n_wiki, n_embedding, n_hidden)
    note = jax.random.randint(k_note, (B, L), 0, n_words + 1, jnp.int32)

    scores = jax.block_until_ready(caml_forward(note, params))
    ref = jax.block_until_ready(caml_reference(note, params))

    assert scores.shape == (B, n_wiki)
    err = float(jnp.max(jnp.abs(scores - ref)))
    assert jnp.allclose(scores, ref, atol=1e-2, rtol=1e-2), (
        f"mismatch: max abs diff {err}")

    # TODO(synk): self.ksi branch (forward_ksi) not modeled — ksi=None here.
    print("KERNEL_OK")
</pallas_src>

<mosaic_0001>
module attributes {stable_mosaic.version = 11 : i64} {
  func.func @conv_kernel(%arg0: i32, %arg1: memref<1x41x32xbf16, #tpu.memory_space<vmem>>, %arg2: memref<10x32x32xbf16, #tpu.memory_space<vmem>>, %arg3: memref<1x32xf32, #tpu.memory_space<vmem>>, %arg4: memref<1x32x32xbf16, #tpu.memory_space<vmem>>) attributes {dimension_semantics = [#tpu.dimension_semantics<parallel>], iteration_bounds = array<i64: 2>, scalar_prefetch = 0 : i64, scratch_operands = 0 : i64, tpu.core_type = #tpu.core_type<tc>, window_params = [{transform_indices = @transform_0, window_bounds = array<i64: 1, 41, 32>}, {pipeline_mode = #tpu.pipeline_mode<synchronous>, transform_indices = @transform_1, window_bounds = array<i64: 10, 32, 32>}, {pipeline_mode = #tpu.pipeline_mode<synchronous>, transform_indices = @transform_2, window_bounds = array<i64: 1, 32>}, {transform_indices = @transform_3, window_bounds = array<i64: 1, 32, 32>}]} {
    %c0 = arith.constant 0 : index
    %c0_0 = arith.constant 0 : index
    %c0_1 = arith.constant 0 : index
    %0 = vector.load %arg1[%c0, %c0_0, %c0_1] : memref<1x41x32xbf16, #tpu.memory_space<vmem>>, vector<1x41x32xbf16>
    %1 = vector.shape_cast %0 : vector<1x41x32xbf16> to vector<41x32xbf16>
    %2 = vector.extract_strided_slice %1 {offsets = [0, 0], sizes = [32, 32], strides = [1, 1]} : vector<41x32xbf16> to vector<32x32xbf16>
    %c0_2 = arith.constant 0 : index
    %c0_3 = arith.constant 0 : index
    %c0_4 = arith.constant 0 : index
    %3 = vector.load %arg2[%c0_2, %c0_3, %c0_4] : memref<10x32x32xbf16, #tpu.memory_space<vmem>>, vector<1x32x32xbf16>
    %4 = vector.shape_cast %3 : vector<1x32x32xbf16> to vector<32x32xbf16>
    %cst = arith.constant dense<0.000000e+00> : vector<32x32xf32>
    %5 = tpu.matmul %2, %4, %cst {dimension_numbers = #tpu.dot_dimension_numbers<[1], [0], [0], [1], [0, 0, 1, 1], [], []>} : vector<32x32xbf16>, vector<32x32xbf16>, vector<32x32xf32> -> vector<32x32xf32>
    %6 = vector.extract_strided_slice %1 {offsets = [1, 0], sizes = [32, 32], strides = [1, 1]} : vector<41x32xbf16> to vector<32x32xbf16>
    %c1 = arith.constant 1 : index
    %c0_5 = arith.constant 0 : index
    %c0_6 = arith.constant 0 : index
    %7 = vector.load %arg2[%c1, %c0_5, %c0_6] : memref<10x32x32xbf16, #tpu.memory_space<vmem>>, vector<1x32x32xbf16>
    %8 = vector.shape_cast %7 : vector<1x32x32xbf16> to vector<32x32xbf16>
    %cst_7 = arith.constant dense<0.000000e+00> : vector<32x32xf32>
    %9 = tpu.matmul %6, %8, %cst_7 {dimension_numbers = #tpu.dot_dimension_numbers<[1], [0], [0], [1], [0, 0, 1, 1], [], []>} : vector<32x32xbf16>, vector<32x32xbf16>, vector<32x32xf32> -> vector<32x32xf32>
    %10 = arith.addf %5, %9 : vector<32x32xf32>
    %11 = vector.extract_strided_slice %1 {offsets = [2, 0], sizes = [32, 32], strides = [1, 1]} : vector<41x32xbf16> to vector<32x32xbf16>
    %c2 = arith.constant 2 : index
    %c0_8 = arith.constant 0 : index
    %c0_9 = arith.constant 0 : index
    %12 = vector.load %arg2[%c2, %c0_8, %c0_9] : memref<10x32x32xbf16, #tpu.memory_space<vmem>>, vector<1x32x32xbf16>
    %13 = vector.shape_cast %12 : vector<1x32x32xbf16> to vector<32x32xbf16>
    %cst_10 = arith.constant dense<0.000000e+00> : vector<32x32xf32>
    %14 = tpu.matmul %11, %13, %cst_10 {dimension_numbers = #tpu.dot_dimension_numbers<[1], [0], [0], [1], [0, 0, 1, 1], [], []>} : vector<32x32xbf16>, vector<32x32xbf16>, vector<32x32xf32> -> vector<32x32xf32>
    %15 = arith.addf %10, %14 : vector<32x32xf32>
    %16 = vector.extract_strided_slice %1 {offsets = [3, 0], sizes = [32, 32], strides = [1, 1]} : vector<41x32xbf16> to vector<32x32xbf16>
    %c3 = arith.constant 3 : index
    %c0_11 = arith.constant 0 : index
    %c0_12 = arith.constant 0 : index
    %17 = vector.load %arg2[%c3, %c0_11, %c0_12] : memref<10x32x32xbf16, #tpu.memory_space<vmem>>, vector<1x32x32xbf16>
    %18 = vector.shape_cast %17 : vector<1x32x32xbf16> to vector<32x32xbf16>
    %cst_13 = arith.constant dense<0.000000e+00> : vector<32x32xf32>
    %19 = tpu.matmul %16, %18, %cst_13 {dimension_numbers = #tpu.dot_dimension_numbers<[1], [0], [0], [1], [0, 0, 1, 1], [], []>} : vector<32x32xbf16>, vector<32x32xbf16>, vector<32x32xf32> -> vector<32x32xf32>
    %20 = arith.addf %15, %19 : vector<32x32xf32>
    %21 = vector.extract_strided_slice %1 {offsets = [4, 0], sizes = [32, 32], strides = [1, 1]} : vector<41x32xbf16> to vector<32x32xbf16>
    %c4 = arith.constant 4 : index
    %c0_14 = arith.constant 0 : index
    %c0_15 = arith.constant 0 : index
    %22 = vector.load %arg2[%c4, %c0_14, %c0_15] : memref<10x32x32xbf16, #tpu.memory_space<vmem>>, vector<1x32x32xbf16>
    %23 = vector.shape_cast %22 : vector<1x32x32xbf16> to vector<32x32xbf16>
    %cst_16 = arith.constant dense<0.000000e+00> : vector<32x32xf32>
    %24 = tpu.matmul %21, %23, %cst_16 {dimension_numbers = #tpu.dot_dimension_numbers<[1], [0], [0], [1], [0, 0, 1, 1], [], []>} : vector<32x32xbf16>, vector<32x32xbf16>, vector<32x32xf32> -> vector<32x32xf32>
    %25 = arith.addf %20, %24 : vector<32x32xf32>
    %26 = vector.extract_strided_slice %1 {offsets = [5, 0], sizes = [32, 32], strides = [1, 1]} : vector<41x32xbf16> to vector<32x32xbf16>
    %c5 = arith.constant 5 : index
    %c0_17 = arith.constant 0 : index
    %c0_18 = arith.constant 0 : index
    %27 = vector.load %arg2[%c5, %c0_17, %c0_18] : memref<10x32x32xbf16, #tpu.memory_space<vmem>>, vector<1x32x32xbf16>
    %28 = vector.shape_cast %27 : vector<1x32x32xbf16> to vector<32x32xbf16>
    %cst_19 = arith.constant dense<0.000000e+00> : vector<32x32xf32>
    %29 = tpu.matmul %26, %28, %cst_19 {dimension_numbers = #tpu.dot_dimension_numbers<[1], [0], [0], [1], [0, 0, 1, 1], [], []>} : vector<32x32xbf16>, vector<32x32xbf16>, vector<32x32xf32> -> vector<32x32xf32>
    %30 = arith.addf %25, %29 : vector<32x32xf32>
    %31 = vector.extract_strided_slice %1 {offsets = [6, 0], sizes = [32, 32], strides = [1, 1]} : vector<41x32xbf16> to vector<32x32xbf16>
    %c6 = arith.constant 6 : index
    %c0_20 = arith.constant 0 : index
    %c0_21 = arith.constant 0 : index
    %32 = vector.load %arg2[%c6, %c0_20, %c0_21] : memref<10x32x32xbf16, #tpu.memory_space<vmem>>, vector<1x32x32xbf16>
    %33 = vector.shape_cast %32 : vector<1x32x32xbf16> to vector<32x32xbf16>
    %cst_22 = arith.constant dense<0.000000e+00> : vector<32x32xf32>
    %34 = tpu.matmul %31, %33, %cst_22 {dimension_numbers = #tpu.dot_dimension_numbers<[1], [0], [0], [1], [0, 0, 1, 1], [], []>} : vector<32x32xbf16>, vector<32x32xbf16>, vector<32x32xf32> -> vector<32x32xf32>
    %35 = arith.addf %30, %34 : vector<32x32xf32>
    %36 = vector.extract_strided_slice %1 {offsets = [7, 0], sizes = [32, 32], strides = [1, 1]} : vector<41x32xbf16> to vector<32x32xbf16>
    %c7 = arith.constant 7 : index
    %c0_23 = arith.constant 0 : index
    %c0_24 = arith.constant 0 : index
    %37 = vector.load %arg2[%c7, %c0_23, %c0_24] : memref<10x32x32xbf16, #tpu.memory_space<vmem>>, vector<1x32x32xbf16>
    %38 = vector.shape_cast %37 : vector<1x32x32xbf16> to vector<32x32xbf16>
    %cst_25 = arith.constant dense<0.000000e+00> : vector<32x32xf32>
    %39 = tpu.matmul %36, %38, %cst_25 {dimension_numbers = #tpu.dot_dimension_numbers<[1], [0], [0], [1], [0, 0, 1, 1], [], []>} : vector<32x32xbf16>, vector<32x32xbf16>, vector<32x32xf32> -> vector<32x32xf32>
    %40 = arith.addf %35, %39 : vector<32x32xf32>
    %41 = vector.extract_strided_slice %1 {offsets = [8, 0], sizes = [32, 32], strides = [1, 1]} : vector<41x32xbf16> to vector<32x32xbf16>
    %c8 = arith.constant 8 : index
    %c0_26 = arith.constant 0 : index
    %c0_27 = arith.constant 0 : index
    %42 = vector.load %arg2[%c8, %c0_26, %c0_27] : memref<10x32x32xbf16, #tpu.memory_space<vmem>>, vector<1x32x32xbf16>
    %43 = vector.shape_cast %42 : vector<1x32x32xbf16> to vector<32x32xbf16>
    %cst_28 = arith.constant dense<0.000000e+00> : vector<32x32xf32>
    %44 = tpu.matmul %41, %43, %cst_28 {dimension_numbers = #tpu.dot_dimension_numbers<[1], [0], [0], [1], [0, 0, 1, 1], [], []>} : vector<32x32xbf16>, vector<32x32xbf16>, vector<32x32xf32> -> vector<32x32xf32>
    %45 = arith.addf %40, %44 : vector<32x32xf32>
    %46 = vector.extract_strided_slice %1 {offsets = [9, 0], sizes = [32, 32], strides = [1, 1]} : vector<41x32xbf16> to vector<32x32xbf16>
    %c9 = arith.constant 9 : index
    %c0_29 = arith.constant 0 : index
    %c0_30 = arith.constant 0 : index
    %47 = vector.load %arg2[%c9, %c0_29, %c0_30] : memref<10x32x32xbf16, #tpu.memory_space<vmem>>, vector<1x32x32xbf16>
    %48 = vector.shape_cast %47 : vector<1x32x32xbf16> to vector<32x32xbf16>
    %cst_31 = arith.constant dense<0.000000e+00> : vector<32x32xf32>
    %49 = tpu.matmul %46, %48, %cst_31 {dimension_numbers = #tpu.dot_dimension_numbers<[1], [0], [0], [1], [0, 0, 1, 1], [], []>} : vector<32x32xbf16>, vector<32x32xbf16>, vector<32x32xf32> -> vector<32x32xf32>
    %50 = arith.addf %45, %49 : vector<32x32xf32>
    %c0_32 = arith.constant 0 : index
    %c0_33 = arith.constant 0 : index
    %51 = vector.load %arg3[%c0_32, %c0_33] : memref<1x32xf32, #tpu.memory_space<vmem>>, vector<1x32xf32>
    %52 = vector.broadcast %51 : vector<1x32xf32> to vector<32x32xf32>
    %53 = arith.addf %50, %52 : vector<32x32xf32>
    %cst_34 = arith.constant 0.000000e+00 : f32
    %54 = vector.broadcast %cst_34 : f32 to vector<32x32xf32>
    %55 = arith.maximumf %53, %54 : vector<32x32xf32>
    %56 = arith.truncf %55 : vector<32x32xf32> to vector<32x32xbf16>
    %c0_35 = arith.constant 0 : index
    %c0_36 = arith.constant 0 : index
    %c0_37 = arith.constant 0 : index
    %57 = vector.load %arg4[%c0_35, %c0_36, %c0_37] : memref<1x32x32xbf16, #tpu.memory_space<vmem>>, vector<1x32x32xbf16>
    %58 = vector.shape_cast %57 : vector<1x32x32xbf16> to vector<32x32xbf16>
    %59 = vector.shape_cast %56 : vector<32x32xbf16> to vector<1x32x32xbf16>
    tpu.vector_store %arg4[%c0_35, %c0_36, %c0_37], %59 {strides = array<i32>} : memref<1x32x32xbf16, #tpu.memory_space<vmem>>, vector<1x32x32xbf16>,
    return
  }
  func.func @transform_0(%arg0: i32) -> (i32, i32, i32) {
    %c0_i32 = arith.constant 0 : i32
    %c0_i32_0 = arith.constant 0 : i32
    %c0_i32_1 = arith.constant 0 : i32
    return %arg0, %c0_i32, %c0_i32_0 : i32, i32, i32
  }
  func.func @transform_1(%arg0: i32) -> (i32, i32, i32) {
    %c0_i32 = arith.constant 0 : i32
    %c0_i32_0 = arith.constant 0 : i32
    %c0_i32_1 = arith.constant 0 : i32
    %c0_i32_2 = arith.constant 0 : i32
    return %c0_i32, %c0_i32_0, %c0_i32_1 : i32, i32, i32
  }
  func.func @transform_2(%arg0: i32) -> (i32, i32) {
    %c0_i32 = arith.constant 0 : i32
    %c0_i32_0 = arith.constant 0 : i32
    %c0_i32_1 = arith.constant 0 : i32
    return %c0_i32, %c0_i32_0 : i32, i32
  }
  func.func @transform_3(%arg0: i32) -> (i32, i32, i32) {
    %c0_i32 = arith.constant 0 : i32
    %c0_i32_0 = arith.constant 0 : i32
    %c0_i32_1 = arith.constant 0 : i32
    return %arg0, %c0_i32, %c0_i32_0 : i32, i32, i32
  }
}

</mosaic_0001>

<llo_original>
// kernel: tpu_custom_call.1
$region0: #{tpu_custom_call.1}
  #allocation0 [shape = 'u32[]', space=smem, size = 0x4, offset = 0x4, fixed_abs, tag = 'smem constant byte address 0x4 - core index']
  #allocation1 [shape = 'u32[144,128]{1,0:T(1,128)}', space=vmem, size = 0x12000, scoped, tag = 'internal scratch']
  %s0 = inlined_call_operand.vmem [shape: bf16[2,41,32], index: 0, kind: input, shape index: {}]
  %s1 = inlined_call_operand.hbm [shape: bf16[10,32,32], index: 1, kind: input, shape index: {}]
  %s2 = inlined_call_operand.vmem [shape: f32[1,32], index: 2, kind: input, shape index: {}]
  %s3 = inlined_call_operand.hbm [shape: bf16[2,32,32], index: 3, kind: output, shape index: {}]
  %s4 = sld [smem:[#allocation0]]
  $region49: #{tpu_custom_call.1} parent=0
    _
  %s6 = ssub.s32 1, %s4
  %s7 = scalar_select 0, %s6, %s4
  $region1: #{tpu_custom_call.1} parent=0
    #allocation2 [shape = 'u8[81920]{0}', space=vmem, size = 0x14000, scoped, tag = 'input window, operand 1, single buffered']
    #allocation3 [shape = 's32[2]{0}', space=sflag, size = 0x8, scoped, tag = 'scoped memory for tpu_custom_call.1']
    #allocation4 [shape = 's32[2]{0}', space=sflag, size = 0x8, scoped, tag = 'scoped memory for tpu_custom_call.1']
    #allocation5 [shape = 'u8[16384]{0}', space=vmem, size = 0x4000, scoped, tag = 'output window, operand 0']
    %8 = vsyncpa [#allocation3], 0
    %9 = vsyncpa [#allocation4], 0
    %s10 = scalar_lea.sflag [#allocation4], 1
    %11 = vsyncpa %s10, 0
    loop: start=0, step=1, limit=4
    $region2: #{tpu_custom_call.1} parent=1 // loop_pre_header
      _
    $region3: #{tpu_custom_call.1} parent=1 // loop_header
      %s13 = sphi 0, %s17
      %p14 = scmp.ge.s32.totalorder %s13, 4
      %s23 = sphi 0, %s25
      %s26 = sphi 0, %s23
      %s27 = sphi 0, %s26
      %s43 = sphi 0, %s27
      %s47 = sphi 0, %s47
      %s49 = sphi 0, %s47
      %s50 = sphi 0, %s49
      %s64 = sphi 0, %s50
      %s68 = sphi 0, %s68
      %s70 = sphi 0, %s68
      %s71 = sphi 0, %s70
      %s85 = sphi 0, %s71
      %s91 = sphi 0, %s93
      %s94 = sphi 0, %s91
      %s95 = sphi 0, %s94
      %s111 = sphi 0, %s95
    $region4: #{tpu_custom_call.1} parent=1 // loop_header_branch
      %16 = sbr.rel (%p14) target = $region8
    $region5: #{tpu_custom_call.1} parent=1 // loop_body
      %s18 = ssub.s32 %s13, 1
      %s19 = ssub.s32 %s13, 2
      %s20 = sadd.s32 %s13, 1
      %s21 = ssub.s32 %s13, %s20
      %p22 = scmp.eq.s32.totalorder %s21, 0
      %s24 = sadd.s32 %s23, 1
      %s25 = scalar_select %p22, %s23, %s24
      %p28 = pneg %p22
      %p29 = scmp.eq.s32.totalorder %s13, 1
      %p30 = por %p28, %p29
      %p31 = scmp.ne.s32.totalorder %s23, %s26
      %p32 = scmp.eq.s32.totalorder %s13, 0
      %p33 = por %p31, %p32
      %p34 = scmp.ne.s32.totalorder %s23, %s26
      %p35 = scmp.eq.s32.totalorder %s18, 1
      %p36 = por %p34, %p35
      %p37 = scmp.ne.s32.totalorder %s26, %s27
      %p38 = scmp.eq.s32.totalorder %s18, 0
      %p39 = por %p37, %p38
      %p40 = scmp.ne.s32.totalorder %s26, %s27
      %p41 = scmp.eq.s32.totalorder %s19, 1
      %p42 = por %p40, %p41
      %p44 = scmp.ne.s32.totalorder %s27, %s43
      %p45 = scmp.eq.s32.totalorder %s19, 0
      %p46 = por %p44, %p45
      %s48 = sadd.s32 %s47, 1
      %p51 = scmp.eq.s32.totalorder %s13, 1
      %p52 = scmp.ne.s32.totalorder %s47, %s49
      %p53 = scmp.eq.s32.totalorder %s13, 0
      %p54 = por %p52, %p53
      %p55 = scmp.ne.s32.totalorder %s47, %s49
      %p56 = scmp.eq.s32.totalorder %s18, 1
      %p57 = por %p55, %p56
      %p58 = scmp.ne.s32.totalorder %s49, %s50
      %p59 = scmp.eq.s32.totalorder %s18, 0
      %p60 = por %p58, %p59
      %p61 = scmp.ne.s32.totalorder %s49, %s50
      %p62 = scmp.eq.s32.totalorder %s19, 1
      %p63 = por %p61, %p62
      %p65 = scmp.ne.s32.totalorder %s50, %s64
      %p66 = scmp.eq.s32.totalorder %s19, 0
      %p67 = por %p65, %p66
      %s69 = sadd.s32 %s68, 1
      %p72 = scmp.eq.s32.totalorder %s13, 1
      %p73 = scmp.ne.s32.totalorder %s68, %s70
      %p74 = scmp.eq.s32.totalorder %s13, 0
      %p75 = por %p73, %p74
      %p76 = scmp.ne.s32.totalorder %s68, %s70
      %p77 = scmp.eq.s32.totalorder %s18, 1
      %p78 = por %p76, %p77
      %p79 = scmp.ne.s32.totalorder %s70, %s71
      %p80 = scmp.eq.s32.totalorder %s18, 0
      %p81 = por %p79, %p80
      %p82 = scmp.ne.s32.totalorder %s70, %s71
      %p83 = scmp.eq.s32.totalorder %s19, 1
      %p84 = por %p82, %p83
      %p86 = scmp.ne.s32.totalorder %s71, %s85
      %p87 = scmp.eq.s32.totalorder %s19, 0
      %p88 = por %p86, %p87
      %s89 = ssub.s32 %s13, %s20
      %p90 = scmp.eq.s32.totalorder %s89, 0
      %s92 = sadd.s32 %s91, 1
      %s93 = scalar_select %p90, %s91, %s92
      %p96 = pneg %p90
      %p97 = scmp.eq.s32.totalorder %s13, 1
      %p98 = por %p96, %p97
      %p99 = scmp.ne.s32.totalorder %s91, %s94
      %p100 = scmp.eq.s32.totalorder %s13, 0
      %p101 = por %p99, %p100
      %p102 = scmp.ne.s32.totalorder %s91, %s94
      %p103 = scmp.eq.s32.totalorder %s18, 1
      %p104 = por %p102, %p103
      %p105 = scmp.ne.s32.totalorder %s94, %s95
      %p106 = scmp.eq.s32.totalorder %s18, 0
      %p107 = por %p105, %p106
      %p108 = scmp.ne.s32.totalorder %s94, %s95
      %p109 = scmp.eq.s32.totalorder %s19, 1
      %p110 = por %p108, %p109
      %p112 = scmp.ne.s32.totalorder %s95, %s111
      %p113 = scmp.eq.s32.totalorder %s19, 0
      %p114 = por %p112, %p113
      %p115 = scmp.le.s32.totalorder 1, %s13
      %p116 = scmp.lt.s32.totalorder %s13, 3
      %p117 = pnand %p115, %p116
      %p118 = pneg %p117
      // Predicated region
      $region9: #{tpu_custom_call.1} parent=5 // pred_check
        _
      $region10: #{tpu_custom_call.1} parent=5 // pred_check_branch
        %120 = sbr.rel (%p117) target = $region12
      $region11: #{tpu_custom_call.1} parent=5 // pred_region
        %s121 = ssub.s32 %s13, 1
        // Predicated region
        $region13: #{tpu_custom_call.1} parent=11 // pred_check
          %p122 = pneg %p60
        $region14: #{tpu_custom_call.1} parent=11 // pred_check_branch
          %124 = sbr.rel (%p122) target = $region16
        $region15: #{tpu_custom_call.1} parent=11 // pred_region
          %s126 = ssub.s32 2560, 2560
          %127 = vsyncadd [#allocation3], %s126
          %s128 = sshll.u32 [#allocation2], 4
          %s129 = int_to_ptr.vmem [resolvable:$true] %s128
          %134 = dma.hbm_to_vmem [thread:$0]  %s1, 2560, %s129, [#allocation3], 64, 64, 4
        $region16: #{tpu_custom_call.1} parent=11 // pred_fallthru
          _
        // Predicated region
        $region17: #{tpu_custom_call.1} parent=11 // pred_check
          %p135 = pneg %p81
        $region18: #{tpu_custom_call.1} parent=11 // pred_check_branch
          %137 = sbr.rel (%p135) target = $region20
        $region19: #{tpu_custom_call.1} parent=11 // pred_region
          _
        $region20: #{tpu_custom_call.1} parent=11 // pred_fallthru
          _
      $region12: #{tpu_custom_call.1} parent=5 // pred_fallthru
        _
      %p138 = scmp.lt.s32.totalorder %s13, 2
      // Predicated region
      $region21: #{tpu_custom_call.1} parent=5 // pred_check
        %p139 = pneg %p138
      $region22: #{tpu_custom_call.1} parent=5 // pred_check_branch
        %141 = sbr.rel (%p139) target = $region24
      $region23: #{tpu_custom_call.1} parent=5 // pred_region
        // Predicated region
        $region25: #{tpu_custom_call.1} parent=23 // pred_check
          %p142 = pneg %p33
        $region26: #{tpu_custom_call.1} parent=23 // pred_check_branch
          %144 = sbr.rel (%p142) target = $region28
        $region27: #{tpu_custom_call.1} parent=23 // pred_region
          %p145 = scmp.lt.s32.totalorder %s13, 1
          %s146 = scalar_select %p145, %s13, 1
          %s147 = smul.addr %s146, 6
          %s148 = smul.addr %s147, 4
          %s149 = scalar_lea.vmem %s0, %s148
        $region28: #{tpu_custom_call.1} parent=23 // pred_fallthru
          _
      $region24: #{tpu_custom_call.1} parent=5 // pred_fallthru
        _
      %p150 = scmp.le.s32.totalorder 1, %s13
      %p151 = scmp.lt.s32.totalorder %s13, 3
      %p152 = pnand %p150, %p151
      %p153 = pneg %p152
      // Predicated region
      $region29: #{tpu_custom_call.1} parent=5 // pred_check
        _
      $region30: #{tpu_custom_call.1} parent=5 // pred_check_branch
        %155 = sbr.rel (%p152) target = $region32
      $region31: #{tpu_custom_call.1} parent=5 // pred_region
        %s156 = ssub.s32 %s13, 1
        // Predicated region
        $region33: #{tpu_custom_call.1} parent=31 // pred_check
          %p157 = pneg %p60
        $region34: #{tpu_custom_call.1} parent=31 // pred_check_branch
          %159 = sbr.rel (%p157) target = $region36
        $region35: #{tpu_custom_call.1} parent=31 // pred_region
          %160 = dma.done [#allocation3], 2560
        $region36: #{tpu_custom_call.1} parent=31 // pred_fallthru
          _
        %p161 = scmp.lt.s32.totalorder %s18, 1
        %s162 = scalar_select %p161, %s18, 1
        %s163 = smul.addr %s162, 6
        %s164 = smul.addr %s163, 4
        %s165 = scalar_lea.vmem %s0, %s164
        %p166 = pneg %p39
        %p167 = pneg %p36
        %p168 = pneg %p60
        %p169 = pneg %p57
        %p170 = pneg %p81
        %p171 = pneg %p78
        %p172 = pneg %p107
        %p173 = pneg %p104
        %s174 = sand.u32 %s94, 1
        %s175 = scalar_lea.sflag [#allocation4], %s174
        %s176 = sand.u32 %s94, 1
        %s177 = smul.addr %s176, 16
        %s178 = scalar_lea.vmem [#allocation5], %s177
        %p179 = scmp.lt.s32.totalorder %s18, 1
        %s180 = scalar_select %p179, %s18, 1
        %s181 = smul.addr %s180, 6
        %s182 = smul.addr %s181, 4
        %s183 = scalar_lea.vmem %s0, %s182
        %v185 = vld [vmem:[%s183] sm:$0xf]
        %v186 = vld [vmem:[%s183 + $0x4] sm:$0xf]
        %v187 = vld [vmem:[%s183 + $0x8] sm:$0xf]
        %v188 = vld [vmem:[%s183 + $0xc] sm:$0xf]
        %v189 = vld [vmem:[%s183 + $0x10] sm:$0xf]
        %v190 = vld [vmem:[%s183 + $0x14] sm:$0x1]
        %v191 = vld [vmem:[#allocation2] sm:$0xf]
        %v192 = vld [vmem:[#allocation2 + $0x4] sm:$0xf]
        %v193 = vld [vmem:[#allocation2 + $0x8] sm:$0xf]
        %v194 = vld [vmem:[#allocation2 + $0xc] sm:$0xf]
        %s195 = scalar_lea.vmem [#allocation2], 16
        %v196 = vld [vmem:[%s195] sm:$0xf]
        %v197 = vld [vmem:[%s195 + $0x4] sm:$0xf]
        %v198 = vld [vmem:[%s195 + $0x8] sm:$0xf]
        %v199 = vld [vmem:[%s195 + $0xc] sm:$0xf]
        %v205 = vunpack.c.l.b16 %v185
        %v206 = vunpack.c.l.b16 %v186
        %v207 = vunpack.c.l.b16 %v187
        %v208 = vunpack.c.l.b16 %v188
        %v209 = vunpack.c.l.b16 %v189
        %v210 = vpack.c.b16 %v206, %v205
        %v211 = vpack.c.b16 %v208, %v207
        %v212 = vpack.c.b16 %v209, %v209
        %vm213 = vsmask.f32 7424
        %v215 = vshrl.u32 %v210, 16
        %v217 = vshll.u32 %v210, 16
        %v219 = vrot.slane %v217, 1
        %v220 = vor.u32 %v215, %v219
        %v222 = vshll.u32 %v211, 16
        %v224 = vrot.slane %v222, 1
        %v225 = vsel %vm213, %v220, %v224
        %v226 = vshrl.u32 %v211, 16
        %v228 = vor.u32 %v226, %v224
        %v230 = vshll.u32 %v212, 16
        %v232 = vrot.slane %v230, 1
        %v233 = vsel %vm213, %v228, %v232
        %v238 = vunpack.c.l.b16 %v196
        %v239 = vunpack.c.l.b16 %v197
        %v240 = vunpack.c.l.b16 %v198
        %v241 = vunpack.c.l.b16 %v199
        %v242 = vpack.c.b16 %v239, %v238
        %v243 = vpack.c.b16 %v241, %v240
        %vm246 = vcmask 261120
        %v248 = vsel %vm246, %v225, 0
        %v251 = vsel %vm246, %v233, 0
        %253 = vmatprep.subr.bf16.mxu0 0
        %254 = vmatpush1.bf16.msra.mxu0 %v242
        %255 = vmatprep.subr.bf16.mxu0 0
        %256 = vmatpush1.bf16.msra.mxu0 %v243
        %257 = vmatprep.subr.bf16.mxu0 0
        %258 = vmatpush1.bf16.msra.mxu0 0
        %259 = vmatprep.subr.bf16.mxu0 0
        %260 = vmatpush1.bf16.msra.mxu0 0
        %261 = vmatprep.subr.bf16.mxu0 0
        %262 = vmatpush1.bf16.msra.mxu0 0
        %263 = vmatprep.subr.bf16.mxu0 0
        %264 = vmatpush1.bf16.msra.mxu0 0
        %265 = vmatprep.subr.bf16.mxu0 0
        %266 = vmatpush1.bf16.msra.mxu0 0
        %267 = vmatprep.subr.bf16.mxu0 0
        %268 = vmatpush1.bf16.msra.mxu0 0
        %269 = vmatprep.subr.bf16.mxu0 0
        %270 = vmatpush1.bf16.msra.mxu0 0
        %271 = vmatprep.subr.bf16.mxu0 0
        %272 = vmatpush1.bf16.msra.mxu0 0
        %273 = vmatprep.subr.bf16.mxu0 0
        %274 = vmatpush1.bf16.msra.mxu0 0
        %275 = vmatprep.subr.bf16.mxu0 0
        %276 = vmatpush1.bf16.msra.mxu0 0
        %277 = vmatprep.subr.bf16.mxu0 0
        %278 = vmatpush1.bf16.msra.mxu0 0
        %279 = vmatprep.subr.bf16.mxu0 0
        %280 = vmatpush1.bf16.msra.mxu0 0
        %281 = vmatprep.subr.bf16.mxu0 0
        %282 = vmatpush1.bf16.msra.mxu0 0
        %283 = vmatprep.subr.bf16.mxu0 0
        %284 = vmatpush1.bf16.msra.mxu0 0
        %285 = vmatprep.mubr.bf16.mxu0 0
        %286 = vmatmul.mubr.bf16.gmra.mrb[0].mxu0 %v248
        %v287 = vpop.f32.mrb[0].mxu0
        %v288 = vadd.f32 0.0, %v287
        %v289 = vpop.f32.mrb[0].mxu0
        %v290 = vpop.f32.mrb[0].mxu0
        %v291 = vadd.f32 0.0, %v290
        %v292 = vpop.f32.mrb[0].mxu0
        %293 = vmatprep.mubr.bf16.mxu0 0
        %294 = vmatmul.mubr.bf16.gmra.mrb[0].mxu0 %v251
        %v295 = vpop.f32.mrb[0].mxu0
        %v296 = vadd.f32 0.0, %v295
        %v297 = vpop.f32.mrb[0].mxu0
        %v298 = vpop.f32.mrb[0].mxu0
        %v299 = vadd.f32 0.0, %v298
        %v300 = vpop.f32.mrb[0].mxu0
        %301 = vdwg.mxu0
        %v306 = vunpack.c.l.b16 %v191
        %v307 = vunpack.c.l.b16 %v192
        %v308 = vunpack.c.l.b16 %v193
        %v309 = vunpack.c.l.b16 %v194
        %v310 = vpack.c.b16 %v307, %v306
        %v311 = vpack.c.b16 %v309, %v308
        %v314 = vsel %vm246, %v210, 0
        %v316 = vsel %vm246, %v211, 0
        %318 = vmatprep.subr.bf16.mxu0 0
        %319 = vmatpush1.bf16.msra.mxu0 %v310
        %320 = vmatprep.subr.bf16.mxu0 0
        %321 = vmatpush1.bf16.msra.mxu0 %v311
        %322 = vmatprep.subr.bf16.mxu0 0
        %323 = vmatpush1.bf16.msra.mxu0 0
        %324 = vmatprep.subr.bf16.mxu0 0
        %325 = vmatpush1.bf16.msra.mxu0 0
        %326 = vmatprep.subr.bf16.mxu0 0
        %327 = vmatpush1.bf16.msra.mxu0 0
        %328 = vmatprep.subr.bf16.mxu0 0
        %329 = vmatpush1.bf16.msra.mxu0 0
        %330 = vmatprep.subr.bf16.mxu0 0
        %331 = vmatpush1.bf16.msra.mxu0 0
        %332 = vmatprep.subr.bf16.mxu0 0
        %333 = vmatpush1.bf16.msra.mxu0 0
        %334 = vmatprep.subr.bf16.mxu0 0
        %335 = vmatpush1.bf16.msra.mxu0 0
        %336 = vmatprep.subr.bf16.mxu0 0
        %337 = vmatpush1.bf16.msra.mxu0 0
        %338 = vmatprep.subr.bf16.mxu0 0
        %339 = vmatpush1.bf16.msra.mxu0 0
        %340 = vmatprep.subr.bf16.mxu0 0
        %341 = vmatpush1.bf16.msra.mxu0 0
        %342 = vmatprep.subr.bf16.mxu0 0
        %343 = vmatpush1.bf16.msra.mxu0 0
        %344 = vmatprep.subr.bf16.mxu0 0
        %345 = vmatpush1.bf16.msra.mxu0 0
        %346 = vmatprep.subr.bf16.mxu0 0
        %347 = vmatpush1.bf16.msra.mxu0 0
        %348 = vmatprep.subr.bf16.mxu0 0
        %349 = vmatpush1.bf16.msra.mxu0 0
        %350 = vmatprep.mubr.bf16.mxu0 0
        %351 = vmatmul.mubr.bf16.gmra.mrb[0].mxu0 %v314
        %v352 = vpop.f32.mrb[0].mxu0
        %v353 = vadd.f32 %v288, %v352
        %v354 = vpop.f32.mrb[0].mxu0
        %v355 = vpop.f32.mrb[0].mxu0
        %v356 = vadd.f32 %v291, %v355
        %v357 = vpop.f32.mrb[0].mxu0
        %358 = vmatprep.mubr.bf16.mxu0 0
        %359 = vmatmul.mubr.bf16.gmra.mrb[0].mxu0 %v316
        %v360 = vpop.f32.mrb[0].mxu0
        %v361 = vadd.f32 %v296, %v360
        %v362 = vpop.f32.mrb[0].mxu0
        %v363 = vpop.f32.mrb[0].mxu0
        %v364 = vadd.f32 %v299, %v363
        %v365 = vpop.f32.mrb[0].mxu0
        %366 = vdwg.mxu0
        %s367 = scalar_lea.vmem [#allocation2], 32
        %v368 = vld [vmem:[%s367] sm:$0xf]
        %v369 = vld [vmem:[%s367 + $0x4] sm:$0xf]
        %v370 = vld [vmem:[%s367 + $0x8] sm:$0xf]
        %v371 = vld [vmem:[%s367 + $0xc] sm:$0xf]
        %vm372 = vcmask 1046528
        %v373 = vrot.slane %v210, 1
        %v374 = vrot.slane %v211, 1
        %v375 = vsel %vm372, %v373, %v374
        %v376 = vrot.slane %v212, 1
        %v377 = vsel %vm372, %v374, %v376
        %v382 = vunpack.c.l.b16 %v368
        %v383 = vunpack.c.l.b16 %v369
        %v384 = vunpack.c.l.b16 %v370
        %v385 = vunpack.c.l.b16 %v371
        %v386 = vpack.c.b16 %v383, %v382
        %v387 = vpack.c.b16 %v385, %v384
        %v391 = vsel %vm246, %v375, 0
        %v394 = vsel %vm246, %v377, 0
        %396 = vmatprep.subr.bf16.mxu0 0
        %397 = vmatpush1.bf16.msra.mxu0 %v386
        %398 = vmatprep.subr.bf16.mxu0 0
        %399 = vmatpush1.bf16.msra.mxu0 %v387
        %400 = vmatprep.subr.bf16.mxu0 0
        %401 = vmatpush1.bf16.msra.mxu0 0
        %402 = vmatprep.subr.bf16.mxu0 0
        %403 = vmatpush1.bf16.msra.mxu0 0
        %404 = vmatprep.subr.bf16.mxu0 0
        %405 = vmatpush1.bf16.msra.mxu0 0
        %406 = vmatprep.subr.bf16.mxu0 0
        %407 = vmatpush1.bf16.msra.mxu0 0
        %408 = vmatprep.subr.bf16.mxu0 0
        %409 = vmatpush1.bf16.msra.mxu0 0
        %410 = vmatprep.subr.bf16.mxu0 0
        %411 = vmatpush1.bf16.msra.mxu0 0
        %412 = vmatprep.subr.bf16.mxu0 0
        %413 = vmatpush1.bf16.msra.mxu0 0
        %414 = vmatprep.subr.bf16.mxu0 0
        %415 = vmatpush1.bf16.msra.mxu0 0
        %416 = vmatprep.subr.bf16.mxu0 0
        %417 = vmatpush1.bf16.msra.mxu0 0
        %418 = vmatprep.subr.bf16.mxu0 0
        %419 = vmatpush1.bf16.msra.mxu0 0
        %420 = vmatprep.subr.bf16.mxu0 0
        %421 = vmatpush1.bf16.msra.mxu0 0
        %422 = vmatprep.subr.bf16.mxu0 0
        %423 = vmatpush1.bf16.msra.mxu0 0
        %424 = vmatprep.subr.bf16.mxu0 0
        %425 = vmatpush1.bf16.msra.mxu0 0
        %426 = vmatprep.subr.bf16.mxu0 0
        %427 = vmatpush1.bf16.msra.mxu0 0
        %428 = vmatprep.mubr.bf16.mxu0 0
        %429 = vmatmul.mubr.bf16.gmra.mrb[0].mxu0 %v391
        %v430 = vpop.f32.mrb[0].mxu0
        %v431 = vadd.f32 0.0, %v430
        %v432 = vpop.f32.mrb[0].mxu0
        %v433 = vpop.f32.mrb[0].mxu0
        %v434 = vadd.f32 0.0, %v433
        %v435 = vpop.f32.mrb[0].mxu0
        %436 = vmatprep.mubr.bf16.mxu0 0
        %437 = vmatmul.mubr.bf16.gmra.mrb[0].mxu0 %v394
        %v438 = vpop.f32.mrb[0].mxu0
        %v439 = vadd.f32 0.0, %v438
        %v440 = vpop.f32.mrb[0].mxu0
        %v441 = vpop.f32.mrb[0].mxu0
        %v442 = vadd.f32 0.0, %v441
        %v443 = vpop.f32.mrb[0].mxu0
        %444 = vdwg.mxu0
        %v445 = vadd.f32 %v353, %v431
        %v446 = vadd.f32 %v356, %v434
        %v447 = vadd.f32 %v361, %v439
        %v448 = vadd.f32 %v364, %v442
        %s449 = scalar_lea.vmem [#allocation2], 48
        %v450 = vld [vmem:[%s449] sm:$0xf]
        %v451 = vld [vmem:[%s449 + $0x4] sm:$0xf]
        %v452 = vld [vmem:[%s449 + $0x8] sm:$0xf]
        %v453 = vld [vmem:[%s449 + $0xc] sm:$0xf]
        %vm454 = vsmask.f32 6400
        %v455 = vrot.slane %v215, 1
        %v456 = vrot.slane %v217, 2
        %v457 = vor.u32 %v455, %v456
        %v458 = vrot.slane %v226, 1
        %v459 = vrot.slane %v222, 2
        %v460 = vor.u32 %v458, %v459
        %v461 = vsel %vm454, %v457, %v460
        %v462 = vshrl.u32 %v212, 16
        %v464 = vrot.slane %v462, 1
        %v465 = vrot.slane %v230, 2
        %v466 = vor.u32 %v464, %v465
        %v467 = vsel %vm454, %v460, %v466
        %v472 = vunpack.c.l.b16 %v450
        %v473 = vunpack.c.l.b16 %v451
        %v474 = vunpack.c.l.b16 %v452
        %v475 = vunpack.c.l.b16 %v453
        %v476 = vpack.c.b16 %v473, %v472
        %v477 = vpack.c.b16 %v475, %v474
        %v481 = vsel %vm246, %v461, 0
        %v484 = vsel %vm246, %v467, 0
        %486 = vmatprep.subr.bf16.mxu0 0
        %487 = vmatpush1.bf16.msra.mxu0 %v476
        %488 = vmatprep.subr.bf16.mxu0 0
        %489 = vmatpush1.bf16.msra.mxu0 %v477
        %490 = vmatprep.subr.bf16.mxu0 0
        %491 = vmatpush1.bf16.msra.mxu0 0
        %492 = vmatprep.subr.bf16.mxu0 0
        %493 = vmatpush1.bf16.msra.mxu0 0
        %494 = vmatprep.subr.bf16.mxu0 0
        %495 = vmatpush1.bf16.msra.mxu0 0
        %496 = vmatprep.subr.bf16.mxu0 0
        %497 = vmatpush1.bf16.msra.mxu0 0
        %498 = vmatprep.subr.bf16.mxu0 0
        %499 = vmatpush1.bf16.msra.mxu0 0
        %500 = vmatprep.subr.bf16.mxu0 0
        %501 = vmatpush1.bf16.msra.mxu0 0
        %502 = vmatprep.subr.bf16.mxu0 0
        %503 = vmatpush1.bf16.msra.mxu0 0
        %504 = vmatprep.subr.bf16.mxu0 0
        %505 = vmatpush1.bf16.msra.mxu0 0
        %506 = vmatprep.subr.bf16.mxu0 0
        %507 = vmatpush1.bf16.msra.mxu0 0
        %508 = vmatprep.subr.bf16.mxu0 0
        %509 = vmatpush1.bf16.msra.mxu0 0
        %510 = vmatprep.subr.bf16.mxu0 0
        %511 = vmatpush1.bf16.msra.mxu0 0
        %512 = vmatprep.subr.bf16.mxu0 0
        %513 = vmatpush1.bf16.msra.mxu0 0
        %514 = vmatprep.subr.bf16.mxu0 0
        %515 = vmatpush1.bf16.msra.mxu0 0
        %516 = vmatprep.subr.bf16.mxu0 0
        %517 = vmatpush1.bf16.msra.mxu0 0
        %518 = vmatprep.mubr.bf16.mxu0 0
        %519 = vmatmul.mubr.bf16.gmra.mrb[0].mxu0 %v481
        %v520 = vpop.f32.mrb[0].mxu0
        %v521 = vadd.f32 0.0, %v520
        %v522 = vpop.f32.mrb[0].mxu0
        %v523 = vpop.f32.mrb[0].mxu0
        %v524 = vadd.f32 0.0, %v523
        %v525 = vpop.f32.mrb[0].mxu0
        %526 = vmatprep.mubr.bf16.mxu0 0
        %527 = vmatmul.mubr.bf16.gmra.mrb[0].mxu0 %v484
        %v528 = vpop.f32.mrb[0].mxu0
        %v529 = vadd.f32 0.0, %v528
        %v530 = vpop.f32.mrb[0].mxu0
        %v531 = vpop.f32.mrb[0].mxu0
        %v532 = vadd.f32 0.0, %v531
        %v533 = vpop.f32.mrb[0].mxu0
        %534 = vdwg.mxu0
        %v535 = vadd.f32 %v445, %v521
        %v536 = vadd.f32 %v446, %v524
        %v537 = vadd.f32 %v447, %v529
        %v538 = vadd.f32 %v448, %v532
        %s539 = scalar_lea.vmem [#allocation2], 64
        %v540 = vld [vmem:[%s539] sm:$0xf]
        %v541 = vld [vmem:[%s539 + $0x4] sm:$0xf]
        %v542 = vld [vmem:[%s539 + $0x8] sm:$0xf]
        %v543 = vld [vmem:[%s539 + $0xc] sm:$0xf]
        %vm544 = vcmask 1045504
        %v545 = vrot.slane %v210, 2
        %v546 = vrot.slane %v211, 2
        %v547 = vsel %vm544, %v545, %v546
        %v548 = vrot.slane %v212, 2
        %v549 = vsel %vm544, %v546, %v548
        %v554 = vunpack.c.l.b16 %v540
        %v555 = vunpack.c.l.b16 %v541
        %v556 = vunpack.c.l.b16 %v542
        %v557 = vunpack.c.l.b16 %v543
        %v558 = vpack.c.b16 %v555, %v554
        %v559 = vpack.c.b16 %v557, %v556
        %v563 = vsel %vm246, %v547, 0
        %v566 = vsel %vm246, %v549, 0
        %568 = vmatprep.subr.bf16.mxu0 0
        %569 = vmatpush1.bf16.msra.mxu0 %v558
        %570 = vmatprep.subr.bf16.mxu0 0
        %571 = vmatpush1.bf16.msra.mxu0 %v559
        %572 = vmatprep.subr.bf16.mxu0 0
        %573 = vmatpush1.bf16.msra.mxu0 0
        %574 = vmatprep.subr.bf16.mxu0 0
        %575 = vmatpush1.bf16.msra.mxu0 0
        %576 = vmatprep.subr.bf16.mxu0 0
        %577 = vmatpush1.bf16.msra.mxu0 0
        %578 = vmatprep.subr.bf16.mxu0 0
        %579 = vmatpush1.bf16.msra.mxu0 0
        %580 = vmatprep.subr.bf16.mxu0 0
        %581 = vmatpush1.bf16.msra.mxu0 0
        %582 = vmatprep.subr.bf16.mxu0 0
        %583 = vmatpush1.bf16.msra.mxu0 0
        %584 = vmatprep.subr.bf16.mxu0 0
        %585 = vmatpush1.bf16.msra.mxu0 0
        %586 = vmatprep.subr.bf16.mxu0 0
        %587 = vmatpush1.bf16.msra.mxu0 0
        %588 = vmatprep.subr.bf16.mxu0 0
        %589 = vmatpush1.bf16.msra.mxu0 0
        %590 = vmatprep.subr.bf16.mxu0 0
        %591 = vmatpush1.bf16.msra.mxu0 0
        %592 = vmatprep.subr.bf16.mxu0 0
        %593 = vmatpush1.bf16.msra.mxu0 0
        %594 = vmatprep.subr.bf16.mxu0 0
        %595 = vmatpush1.bf16.msra.mxu0 0
        %596 = vmatprep.subr.bf16.mxu0 0
        %597 = vmatpush1.bf16.msra.mxu0 0
        %598 = vmatprep.subr.bf16.mxu0 0
        %599 = vmatpush1.bf16.msra.mxu0 0
        %600 = vmatprep.mubr.bf16.mxu0 0
        %601 = vmatmul.mubr.bf16.gmra.mrb[0].mxu0 %v563
        %v602 = vpop.f32.mrb[0].mxu0
        %v603 = vadd.f32 0.0, %v602
        %v604 = vpop.f32.mrb[0].mxu0
        %v605 = vpop.f32.mrb[0].mxu0
        %v606 = vadd.f32 0.0, %v605
        %v607 = vpop.f32.mrb[0].mxu0
        %608 = vmatprep.mubr.bf16.mxu0 0
        %609 = vmatmul.mubr.bf16.gmra.mrb[0].mxu0 %v566
        %v610 = vpop.f32.mrb[0].mxu0
        %v611 = vadd.f32 0.0, %v610
        %v612 = vpop.f32.mrb[0].mxu0
        %v613 = vpop.f32.mrb[0].mxu0
        %v614 = vadd.f32 0.0, %v613
        %v615 = vpop.f32.mrb[0].mxu0
        %616 = vdwg.mxu0
        %v617 = vadd.f32 %v535, %v603
        %v618 = vadd.f32 %v536, %v606
        %v619 = vadd.f32 %v537, %v611
        %v620 = vadd.f32 %v538, %v614
        %s621 = scalar_lea.vmem [#allocation2], 80
        %v622 = vld [vmem:[%s621] sm:$0xf]
        %v623 = vld [vmem:[%s621 + $0x4] sm:$0xf]
        %v624 = vld [vmem:[%s621 + $0x8] sm:$0xf]
        %v625 = vld [vmem:[%s621 + $0xc] sm:$0xf]
        %vm626 = vsmask.f32 5376
        %v627 = vrot.slane %v215, 2
        %v628 = vrot.slane %v217, 3
        %v629 = vor.u32 %v627, %v628
        %v630 = vrot.slane %v226, 2
        %v631 = vrot.slane %v222, 3
        %v632 = vor.u32 %v630, %v631
        %v633 = vsel %vm626, %v629, %v632
        %v634 = vrot.slane %v462, 2
        %v635 = vrot.slane %v230, 3
        %v636 = vor.u32 %v634, %v635
        %v637 = vsel %vm626, %v632, %v636
        %v642 = vunpack.c.l.b16 %v622
        %v643 = vunpack.c.l.b16 %v623
        %v644 = vunpack.c.l.b16 %v624
        %v645 = vunpack.c.l.b16 %v625
        %v646 = vpack.c.b16 %v643, %v642
        %v647 = vpack.c.b16 %v645, %v644
        %v651 = vsel %vm246, %v633, 0
        %v654 = vsel %vm246, %v637, 0
        %656 = vmatprep.subr.bf16.mxu0 0
        %657 = vmatpush1.bf16.msra.mxu0 %v646
        %658 = vmatprep.subr.bf16.mxu0 0
        %659 = vmatpush1.bf16.msra.mxu0 %v647
        %660 = vmatprep.subr.bf16.mxu0 0
        %661 = vmatpush1.bf16.msra.mxu0 0
        %662 = vmatprep.subr.bf16.mxu0 0
        %663 = vmatpush1.bf16.msra.mxu0 0
        %664 = vmatprep.subr.bf16.mxu0 0
        %665 = vmatpush1.bf16.msra.mxu0 0
        %666 = vmatprep.subr.bf16.mxu0 0
        %667 = vmatpush1.bf16.msra.mxu0 0
        %668 = vmatprep.subr.bf16.mxu0 0
        %669 = vmatpush1.bf16.msra.mxu0 0
        %670 = vmatprep.subr.bf16.mxu0 0
        %671 = vmatpush1.bf16.msra.mxu0 0
        %672 = vmatprep.subr.bf16.mxu0 0
        %673 = vmatpush1.bf16.msra.mxu0 0
        %674 = vmatprep.subr.bf16.mxu0 0
        %675 = vmatpush1.bf16.msra.mxu0 0
        %676 = vmatprep.subr.bf16.mxu0 0
        %677 = vmatpush1.bf16.msra.mxu0 0
        %678 = vmatprep.subr.bf16.mxu0 0
        %679 = vmatpush1.bf16.msra.mxu0 0
        %680 = vmatprep.subr.bf16.mxu0 0
        %681 = vmatpush1.bf16.msra.mxu0 0
        %682 = vmatprep.subr.bf16.mxu0 0
        %683 = vmatpush1.bf16.msra.mxu0 0
        %684 = vmatprep.subr.bf16.mxu0 0
        %685 = vmatpush1.bf16.msra.mxu0 0
        %686 = vmatprep.subr.bf16.mxu0 0
        %687 = vmatpush1.bf16.msra.mxu0 0
        %688 = vmatprep.mubr.bf16.mxu0 0
        %689 = vmatmul.mubr.bf16.gmra.mrb[0].mxu0 %v651
        %v690 = vpop.f32.mrb[0].mxu0
        %v691 = vadd.f32 0.0, %v690
        %v692 = vpop.f32.mrb[0].mxu0
        %v693 = vpop.f32.mrb[0].mxu0
        %v694 = vadd.f32 0.0, %v693
        %v695 = vpop.f32.mrb[0].mxu0
        %696 = vmatprep.mubr.bf16.mxu0 0
        %697 = vmatmul.mubr.bf16.gmra.mrb[0].mxu0 %v654
        %v698 = vpop.f32.mrb[0].mxu0
        %v699 = vadd.f32 0.0, %v698
        %v700 = vpop.f32.mrb[0].mxu0
        %v701 = vpop.f32.mrb[0].mxu0
        %v702 = vadd.f32 0.0, %v701
        %v703 = vpop.f32.mrb[0].mxu0
        %704 = vdwg.mxu0
        %v705 = vadd.f32 %v617, %v691
        %v706 = vadd.f32 %v618, %v694
        %v707 = vadd.f32 %v619, %v699
        %v708 = vadd.f32 %v620, %v702
        %s709 = scalar_lea.vmem [#allocation2], 96
        %v710 = vld [vmem:[%s709] sm:$0xf]
        %v711 = vld [vmem:[%s709 + $0x4] sm:$0xf]
        %v712 = vld [vmem:[%s709 + $0x8] sm:$0xf]
        %v713 = vld [vmem:[%s709 + $0xc] sm:$0xf]
        %vm714 = vcmask 1044480
        %v715 = vrot.slane %v210, 3
        %v716 = vrot.slane %v211, 3
        %v717 = vsel %vm714, %v715, %v716
        %v718 = vrot.slane %v212, 3
        %v719 = vsel %vm714, %v716, %v718
        %v724 = vunpack.c.l.b16 %v710
        %v725 = vunpack.c.l.b16 %v711
        %v726 = vunpack.c.l.b16 %v712
        %v727 = vunpack.c.l.b16 %v713
        %v728 = vpack.c.b16 %v725, %v724
        %v729 = vpack.c.b16 %v727, %v726
        %v733 = vsel %vm246, %v717, 0
        %v736 = vsel %vm246, %v719, 0
        %738 = vmatprep.subr.bf16.mxu0 0
        %739 = vmatpush1.bf16.msra.mxu0 %v728
        %740 = vmatprep.subr.bf16.mxu0 0
        %741 = vmatpush1.bf16.msra.mxu0 %v729
        %742 = vmatprep.subr.bf16.mxu0 0
        %743 = vmatpush1.bf16.msra.mxu0 0
        %744 = vmatprep.subr.bf16.mxu0 0
        %745 = vmatpush1.bf16.msra.mxu0 0
        %746 = vmatprep.subr.bf16.mxu0 0
        %747 = vmatpush1.bf16.msra.mxu0 0
        %748 = vmatprep.subr.bf16.mxu0 0
        %749 = vmatpush1.bf16.msra.mxu0 0
        %750 = vmatprep.subr.bf16.mxu0 0
        %751 = vmatpush1.bf16.msra.mxu0 0
        %752 = vmatprep.subr.bf16.mxu0 0
        %753 = vmatpush1.bf16.msra.mxu0 0
        %754 = vmatprep.subr.bf16.mxu0 0
        %755 = vmatpush1.bf16.msra.mxu0 0
        %756 = vmatprep.subr.bf16.mxu0 0
        %757 = vmatpush1.bf16.msra.mxu0 0
        %758 = vmatprep.subr.bf16.mxu0 0
        %759 = vmatpush1.bf16.msra.mxu0 0
        %760 = vmatprep.subr.bf16.mxu0 0
        %761 = vmatpush1.bf16.msra.mxu0 0
        %762 = vmatprep.subr.bf16.mxu0 0
        %763 = vmatpush1.bf16.msra.mxu0 0
        %764 = vmatprep.subr.bf16.mxu0 0
        %765 = vmatpush1.bf16.msra.mxu0 0
        %766 = vmatprep.subr.bf16.mxu0 0
        %767 = vmatpush1.bf16.msra.mxu0 0
        %768 = vmatprep.subr.bf16.mxu0 0
        %769 = vmatpush1.bf16.msra.mxu0 0
        %770 = vmatprep.mubr.bf16.mxu0 0
        %771 = vmatmul.mubr.bf16.gmra.mrb[0].mxu0 %v733
        %v772 = vpop.f32.mrb[0].mxu0
        %v773 = vadd.f32 0.0, %v772
        %v774 = vpop.f32.mrb[0].mxu0
        %v775 = vpop.f32.mrb[0].mxu0
        %v776 = vadd.f32 0.0, %v775
        %v777 = vpop.f32.mrb[0].mxu0
        %778 = vmatprep.mubr.bf16.mxu0 0
        %779 = vmatmul.mubr.bf16.gmra.mrb[0].mxu0 %v736
        %v780 = vpop.f32.mrb[0].mxu0
        %v781 = vadd.f32 0.0, %v780
        %v782 = vpop.f32.mrb[0].mxu0
        %v783 = vpop.f32.mrb[0].mxu0
        %v784 = vadd.f32 0.0, %v783
        %v785 = vpop.f32.mrb[0].mxu0
        %786 = vdwg.mxu0
        %v787 = vadd.f32 %v705, %v773
        %v788 = vadd.f32 %v706, %v776
        %v789 = vadd.f32 %v707, %v781
        %v790 = vadd.f32 %v708, %v784
        %s791 = scalar_lea.vmem [#allocation2], 112
        %v792 = vld [vmem:[%s791] sm:$0xf]
        %v793 = vld [vmem:[%s791 + $0x4] sm:$0xf]
        %v794 = vld [vmem:[%s791 + $0x8] sm:$0xf]
        %v795 = vld [vmem:[%s791 + $0xc] sm:$0xf]
        %vm796 = vsmask.f32 4352
        %v797 = vrot.slane %v215, 3
        %v798 = vrot.slane %v217, 4
        %v799 = vor.u32 %v797, %v798
        %v800 = vrot.slane %v226, 3
        %v801 = vrot.slane %v222, 4
        %v802 = vor.u32 %v800, %v801
        %v803 = vsel %vm796, %v799, %v802
        %v804 = vrot.slane %v462, 3
        %v805 = vrot.slane %v230, 4
        %v806 = vor.u32 %v804, %v805
        %v807 = vsel %vm796, %v802, %v806
        %v812 = vunpack.c.l.b16 %v792
        %v813 = vunpack.c.l.b16 %v793
        %v814 = vunpack.c.l.b16 %v794
        %v815 = vunpack.c.l.b16 %v795
        %v816 = vpack.c.b16 %v813, %v812
        %v817 = vpack.c.b16 %v815, %v814
        %v821 = vsel %vm246, %v803, 0
        %v824 = vsel %vm246, %v807, 0
        %826 = vmatprep.subr.bf16.mxu0 0
        %827 = vmatpush1.bf16.msra.mxu0 %v816
        %828 = vmatprep.subr.bf16.mxu0 0
        %829 = vmatpush1.bf16.msra.mxu0 %v817
        %830 = vmatprep.subr.bf16.mxu0 0
        %831 = vmatpush1.bf16.msra.mxu0 0
        %832 = vmatprep.subr.bf16.mxu0 0
        %833 = vmatpush1.bf16.msra.mxu0 0
        %834 = vmatprep.subr.bf16.mxu0 0
        %835 = vmatpush1.bf16.msra.mxu0 0
        %836 = vmatprep.subr.bf16.mxu0 0
        %837 = vmatpush1.bf16.msra.mxu0 0
        %838 = vmatprep.subr.bf16.mxu0 0
        %839 = vmatpush1.bf16.msra.mxu0 0
        %840 = vmatprep.subr.bf16.mxu0 0
        %841 = vmatpush1.bf16.msra.mxu0 0
        %842 = vmatprep.subr.bf16.mxu0 0
        %843 = vmatpush1.bf16.msra.mxu0 0
        %844 = vmatprep.subr.bf16.mxu0 0
        %845 = vmatpush1.bf16.msra.mxu0 0
        %846 = vmatprep.subr.bf16.mxu0 0
        %847 = vmatpush1.bf16.msra.mxu0 0
        %848 = vmatprep.subr.bf16.mxu0 0
        %849 = vmatpush1.bf16.msra.mxu0 0
        %850 = vmatprep.subr.bf16.mxu0 0
        %851 = vmatpush1.bf16.msra.mxu0 0
        %852 = vmatprep.subr.bf16.mxu0 0
        %853 = vmatpush1.bf16.msra.mxu0 0
        %854 = vmatprep.subr.bf16.mxu0 0
        %855 = vmatpush1.bf16.msra.mxu0 0
        %856 = vmatprep.subr.bf16.mxu0 0
        %857 = vmatpush1.bf16.msra.mxu0 0
        %858 = vmatprep.mubr.bf16.mxu0 0
        %859 = vmatmul.mubr.bf16.gmra.mrb[0].mxu0 %v821
        %v860 = vpop.f32.mrb[0].mxu0
        %v861 = vadd.f32 0.0, %v860
        %v862 = vpop.f32.mrb[0].mxu0
        %v863 = vpop.f32.mrb[0].mxu0
        %v864 = vadd.f32 0.0, %v863
        %v865 = vpop.f32.mrb[0].mxu0
        %866 = vmatprep.mubr.bf16.mxu0 0
        %867 = vmatmul.mubr.bf16.gmra.mrb[0].mxu0 %v824
        %v868 = vpop.f32.mrb[0].mxu0
        %v869 = vadd.f32 0.0, %v868
        %v870 = vpop.f32.mrb[0].mxu0
        %v871 = vpop.f32.mrb[0].mxu0
        %v872 = vadd.f32 0.0, %v871
        %v873 = vpop.f32.mrb[0].mxu0
        %874 = vdwg.mxu0
        %v875 = vadd.f32 %v787, %v861
        %v876 = vadd.f32 %v788, %v864
        %v877 = vadd.f32 %v789, %v869
        %v878 = vadd.f32 %v790, %v872
        %s879 = scalar_lea.vmem [#allocation2], 128
        %v880 = vld [vmem:[%s879] sm:$0xf]
        %v881 = vld [vmem:[%s879 + $0x4] sm:$0xf]
        %v882 = vld [vmem:[%s879 + $0x8] sm:$0xf]
        %v883 = vld [vmem:[%s879 + $0xc] sm:$0xf]
        %v884 = vpack.c.b16 %v207, %v206
        %v885 = vpack.c.b16 %v209, %v208
        %v890 = vunpack.c.l.b16 %v880
        %v891 = vunpack.c.l.b16 %v881
        %v892 = vunpack.c.l.b16 %v882
        %v893 = vunpack.c.l.b16 %v883
        %v894 = vpack.c.b16 %v891, %v890
        %v895 = vpack.c.b16 %v893, %v892
        %v899 = vsel %vm246, %v884, 0
        %v902 = vsel %vm246, %v885, 0
        %904 = vmatprep.subr.bf16.mxu0 0
        %905 = vmatpush1.bf16.msra.mxu0 %v894
        %906 = vmatprep.subr.bf16.mxu0 0
        %907 = vmatpush1.bf16.msra.mxu0 %v895
        %908 = vmatprep.subr.bf16.mxu0 0
        %909 = vmatpush1.bf16.msra.mxu0 0
        %910 = vmatprep.subr.bf16.mxu0 0
        %911 = vmatpush1.bf16.msra.mxu0 0
        %912 = vmatprep.subr.bf16.mxu0 0
        %913 = vmatpush1.bf16.msra.mxu0 0
        %914 = vmatprep.subr.bf16.mxu0 0
        %915 = vmatpush1.bf16.msra.mxu0 0
        %916 = vmatprep.subr.bf16.mxu0 0
        %917 = vmatpush1.bf16.msra.mxu0 0
        %918 = vmatprep.subr.bf16.mxu0 0
        %919 = vmatpush1.bf16.msra.mxu0 0
        %920 = vmatprep.subr.bf16.mxu0 0
        %921 = vmatpush1.bf16.msra.mxu0 0
        %922 = vmatprep.subr.bf16.mxu0 0
        %923 = vmatpush1.bf16.msra.mxu0 0
        %924 = vmatprep.subr.bf16.mxu0 0
        %925 = vmatpush1.bf16.msra.mxu0 0
        %926 = vmatprep.subr.bf16.mxu0 0
        %927 = vmatpush1.bf16.msra.mxu0 0
        %928 = vmatprep.subr.bf16.mxu0 0
        %929 = vmatpush1.bf16.msra.mxu0 0
        %930 = vmatprep.subr.bf16.mxu0 0
        %931 = vmatpush1.bf16.msra.mxu0 0
        %932 = vmatprep.subr.bf16.mxu0 0
        %933 = vmatpush1.bf16.msra.mxu0 0
        %934 = vmatprep.subr.bf16.mxu0 0
        %935 = vmatpush1.bf16.msra.mxu0 0
        %936 = vmatprep.mubr.bf16.mxu0 0
        %937 = vmatmul.mubr.bf16.gmra.mrb[0].mxu0 %v899
        %v938 = vpop.f32.mrb[0].mxu0
        %v939 = vadd.f32 0.0, %v938
        %v940 = vpop.f32.mrb[0].mxu0
        %v941 = vpop.f32.mrb[0].mxu0
        %v942 = vadd.f32 0.0, %v941
        %v943 = vpop.f32.mrb[0].mxu0
        %944 = vmatprep.mubr.bf16.mxu0 0
        %945 = vmatmul.mubr.bf16.gmra.mrb[0].mxu0 %v902
        %v946 = vpop.f32.mrb[0].mxu0
        %v947 = vadd.f32 0.0, %v946
        %v948 = vpop.f32.mrb[0].mxu0
        %v949 = vpop.f32.mrb[0].mxu0
        %v950 = vadd.f32 0.0, %v949
        %v951 = vpop.f32.mrb[0].mxu0
        %952 = vdwg.mxu0
        %v953 = vadd.f32 %v875, %v939
        %v954 = vadd.f32 %v876, %v942
        %v955 = vadd.f32 %v877, %v947
        %v956 = vadd.f32 %v878, %v950
        %s957 = scalar_lea.vmem [#allocation2], 144
        %v958 = vld [vmem:[%s957] sm:$0xf]
        %v959 = vld [vmem:[%s957 + $0x4] sm:$0xf]
        %v960 = vld [vmem:[%s957 + $0x8] sm:$0xf]
        %v961 = vld [vmem:[%s957 + $0xc] sm:$0xf]
        %v963 = vunpack.c.l.b16 %v190
        %v964 = vpack.c.b16 %v963, %v963
        %v965 = vshrl.u32 %v884, 16
        %v967 = vshll.u32 %v884, 16
        %v969 = vrot.slane %v967, 1
        %v970 = vor.u32 %v965, %v969
        %v971 = vshll.u32 %v885, 16
        %v973 = vrot.slane %v971, 1
        %v974 = vsel %vm213, %v970, %v973
        %v975 = vshrl.u32 %v885, 16
        %v977 = vor.u32 %v975, %v973
        %v979 = vshll.u32 %v964, 16
        %v981 = vrot.slane %v979, 1
        %v982 = vsel %vm213, %v977, %v981
        %v987 = vunpack.c.l.b16 %v958
        %v988 = vunpack.c.l.b16 %v959
        %v989 = vunpack.c.l.b16 %v960
        %v990 = vunpack.c.l.b16 %v961
        %v991 = vpack.c.b16 %v988, %v987
        %v992 = vpack.c.b16 %v990, %v989
        %v996 = vsel %vm246, %v974, 0
        %v999 = vsel %vm246, %v982, 0
        %1001 = vmatprep.subr.bf16.mxu0 0
        %1002 = vmatpush1.bf16.msra.mxu0 %v991
        %1003 = vmatprep.subr.bf16.mxu0 0
        %1004 = vmatpush1.bf16.msra.mxu0 %v992
        %1005 = vmatprep.subr.bf16.mxu0 0
        %1006 = vmatpush1.bf16.msra.mxu0 0
        %1007 = vmatprep.subr.bf16.mxu0 0
        %1008 = vmatpush1.bf16.msra.mxu0 0
        %1009 = vmatprep.subr.bf16.mxu0 0
        %1010 = vmatpush1.bf16.msra.mxu0 0
        %1011 = vmatprep.subr.bf16.mxu0 0
        %1012 = vmatpush1.bf16.msra.mxu0 0
        %1013 = vmatprep.subr.bf16.mxu0 0
        %1014 = vmatpush1.bf16.msra.mxu0 0
        %1015 = vmatprep.subr.bf16.mxu0 0
        %1016 = vmatpush1.bf16.msra.mxu0 0
        %1017 = vmatprep.subr.bf16.mxu0 0
        %1018 = vmatpush1.bf16.msra.mxu0 0
        %1019 = vmatprep.subr.bf16.mxu0 0
        %1020 = vmatpush1.bf16.msra.mxu0 0
        %1021 = vmatprep.subr.bf16.mxu0 0
        %1022 = vmatpush1.bf16.msra.mxu0 0
        %1023 = vmatprep.subr.bf16.mxu0 0
        %1024 = vmatpush1.bf16.msra.mxu0 0
        %1025 = vmatprep.subr.bf16.mxu0 0
        %1026 = vmatpush1.bf16.msra.mxu0 0
        %1027 = vmatprep.subr.bf16.mxu0 0
        %1028 = vmatpush1.bf16.msra.mxu0 0
        %1029 = vmatprep.subr.bf16.mxu0 0
        %1030 = vmatpush1.bf16.msra.mxu0 0
        %1031 = vmatprep.subr.bf16.mxu0 0
        %1032 = vmatpush1.bf16.msra.mxu0 0
        %1033 = vmatprep.mubr.bf16.mxu0 0
        %1034 = vmatmul.mubr.bf16.gmra.mrb[0].mxu0 %v996
        %v1035 = vpop.f32.mrb[0].mxu0
        %v1036 = vadd.f32 0.0, %v1035
        %v1037 = vpop.f32.mrb[0].mxu0
        %v1038 = vpop.f32.mrb[0].mxu0
        %v1039 = vadd.f32 0.0, %v1038
        %v1040 = vpop.f32.mrb[0].mxu0
        %1041 = vmatprep.mubr.bf16.mxu0 0
        %1042 = vmatmul.mubr.bf16.gmra.mrb[0].mxu0 %v999
        %v1043 = vpop.f32.mrb[0].mxu0
        %v1044 = vadd.f32 0.0, %v1043
        %v1045 = vpop.f32.mrb[0].mxu0
        %v1046 = vpop.f32.mrb[0].mxu0
        %v1047 = vadd.f32 0.0, %v1046
        %v1048 = vpop.f32.mrb[0].mxu0
        %1049 = vdwg.mxu0
        %v1050 = vadd.f32 %v953, %v1036
        %v1051 = vadd.f32 %v954, %v1039
        %v1052 = vadd.f32 %v955, %v1044
        %v1053 = vadd.f32 %v956, %v1047
        %v1054 = vld [vmem:[%s2] sm:$0x1]
        %v1056 = vlaneseq
        %v1057 = vshrl.u32 %v1056, 7
        %v1058 = vsub.s32 0, %v1057
        %v1059 = vrot.slane %v1054, %v1058
        %v1061 = vadd.f32 %v1050, %v1059
        %v1062 = vadd.f32 %v1051, %v1059
        %v1063 = vadd.f32 %v1052, %v1059
        %v1064 = vadd.f32 %v1053, %v1059
        %v1065 = vmax.f32 %v1061, 0.0
        %v1066 = vmax.f32 %v1062, 0.0
        %v1067 = vmax.f32 %v1063, 0.0
        %v1068 = vmax.f32 %v1064, 0.0
        %v1069 = vpack.c.bf16 %v1066, %v1065
        %v1070 = vpack.c.bf16 %v1068, %v1067
        %v1073 = vunpack.c.l.b16 %v1069
        %v1074 = vunpack.c.h.b16 %v1069
        %v1075 = vunpack.c.l.b16 %v1070
        %v1076 = vunpack.c.h.b16 %v1070
        %v1077 = vpack.c.b16 %v1073, %v1073
        %v1078 = vpack.c.b16 %v1074, %v1074
        %v1079 = vpack.c.b16 %v1075, %v1075
        %v1080 = vpack.c.b16 %v1076, %v1076
        %vm1085 = vcmask 257024
        %1086 = vst.msk [vmem:[%s178] sm:$0xf] %vm1085, %v1077
        %1087 = vst.msk [vmem:[%s178 + $0x4] sm:$0xf] %vm1085, %v1078
        %1088 = vst.msk [vmem:[%s178 + $0x8] sm:$0xf] %vm1085, %v1079
        %1089 = vst.msk [vmem:[%s178 + $0xc] sm:$0xf] %vm1085, %v1080
        %s1090 = sand.u32 %s94, 1
        %s1091 = scalar_lea.sflag [#allocation4], %s1090
        %s1092 = sand.u32 %s94, 1
        %s1093 = smul.addr %s1092, 16
        %s1094 = scalar_lea.vmem [#allocation5], %s1093
        // Predicated region
        $region37: #{tpu_custom_call.1} parent=31 // pred_check
          %p1095 = pneg %p104
        $region38: #{tpu_custom_call.1} parent=31 // pred_check_branch
          %1097 = sbr.rel (%p1095) target = $region40
        $region39: #{tpu_custom_call.1} parent=31 // pred_region
          %s1099 = ssub.s32 256, 256
          %1100 = vsyncadd %s1091, %s1099
          %s1101 = smul.addr %s18, 4
          %s1102 = smul.addr %s1101, 64
          %s1103 = scalar_lea.hbm %s3, %s1102
          %s1104 = sshll.u32 %s1094, 4
          %s1105 = int_to_ptr.vmem [resolvable:$true] %s1104
          %1110 = dma.vmem_to_hbm [thread:$0]  %s1105, 256, %s1103, %s1091, 64, 64, 4
        $region40: #{tpu_custom_call.1} parent=31 // pred_fallthru
          _
      $region32: #{tpu_custom_call.1} parent=5 // pred_fallthru
        _
      %p1111 = scmp.le.s32.totalorder 2, %s13
      // Predicated region
      $region41: #{tpu_custom_call.1} parent=5 // pred_check
        %p1112 = pneg %p1111
      $region42: #{tpu_custom_call.1} parent=5 // pred_check_branch
        %1114 = sbr.rel (%p1112) target = $region44
      $region43: #{tpu_custom_call.1} parent=5 // pred_region
        %s1115 = ssub.s32 %s13, 2
        // Predicated region
        $region45: #{tpu_custom_call.1} parent=43 // pred_check
          %p1116 = pneg %p110
        $region46: #{tpu_custom_call.1} parent=43 // pred_check_branch
          %1118 = sbr.rel (%p1116) target = $region48
        $region47: #{tpu_custom_call.1} parent=43 // pred_region
          %s1119 = sand.u32 %s95, 1
          %s1120 = scalar_lea.sflag [#allocation4], %s1119
          %s1121 = sand.u32 %s95, 1
          %s1122 = smul.addr %s1121, 16
          %s1123 = scalar_lea.vmem [#allocation5], %s1122
          %1124 = dma.done %s1120, 256
        $region48: #{tpu_custom_call.1} parent=43 // pred_fallthru
          _
      $region44: #{tpu_custom_call.1} parent=5 // pred_fallthru
        _
    $region6: #{tpu_custom_call.1} parent=1 // loop_footer
      %s17 = sadd.s32 1, %s13
    $region7: #{tpu_custom_call.1} parent=1 // loop_footer_branch
      %12 = sbr.rel target = $region3
    $region8: #{tpu_custom_call.1} parent=1 // loop_exit
      _
    %1125 = vsyncpa [#allocation3], 1
    %s1126 = scalar_lea.sflag [#allocation3], 1
    %1127 = vsyncpa %s1126, 1
    %1128 = vsyncpa [#allocation4], 1
    %s1129 = scalar_lea.sflag [#allocation4], 1
    %1130 = vsyncpa %s1129, 1

</llo_original>
